<compile_context>
chip_gen: v7x
topology: tpu7x:2x2x1
jax: 0.10.0
libtpu: 0.0.40
codegen_flags: <defaults>
</compile_context>

<pallas_src>
import jax
import jax.numpy as jnp
import numpy as np
from jax.experimental import pallas as pl
from jax.experimental.pallas import tpu as pltpu


def cross_attention_kernel(z_ref, w_ref, b_ref, o_ref):
    f32, bf16 = jnp.float32, jnp.bfloat16
    M, F2 = z_ref.shape
    F = F2 // 2

    z_in = z_ref[...]                        # (M, 2F) f32, kept for the head math

    # Packed weight slab: [ W1 | Wc | [Wp;Wq] ]; every slice is 128-lane /
    # 8-sublane aligned, so these are cheap tile-aligned views.
    w1 = w_ref[:, 0:F2]                      # (2F, 2F) bf16  correlation_map linear
    wc = w_ref[:, F2:2 * F2]                 # (2F, 2F) bf16  int_dense combine
    wp = w_ref[0:F, 2 * F2:2 * F2 + F]       # (F, F)   bf16  int_dense lin_p
    wq = w_ref[F:F2, 2 * F2:2 * F2 + F]      # (F, F)   bf16  int_dense lin_q

    # Packed biases (f32, added post-accumulation); (1, 2F) rows broadcast
    # along sublanes in the add -- no materialized (M, 2F) broadcasts.
    b1 = b_ref[0:1, :]                       # correlation_map bias
    bpq = b_ref[1:2, :]                      # [bp | bq]
    bc = b_ref[2:3, :]                       # combine bias

    def mxu(a, w):                           # bf16 operands, f32 MXU accumulation
        return jnp.dot(a, w, preferred_element_type=f32)

    # --- correlation_map: shared Linear(2F,2F), depth = 2, ReLU -------------
    z = z_in.astype(bf16)
    for _ in range(2):                       # same nn.Linear object both iterations
        # TODO(synk): nn.Dropout(0.2) is stochastic in train mode; eval-mode
        # semantics (identity) are implemented here.
        z = jnp.maximum(mxu(z, w1) + b1, 0.0).astype(bf16)

    # --- internal_dense ------------------------------------------------------
    # relu(cat(zx@Wp, zy@Wq) + [bp|bq])  ==  cat(relu(zx@Wp+bp), relu(zy@Wq+bq))
    pq = jnp.concatenate([mxu(z[:, 0:F], wp), mxu(z[:, F:], wq)], axis=-1)
    pq = jnp.maximum(pq + bpq, 0.0).astype(bf16)
    zc = jnp.maximum(mxu(pq, wc) + bc, 0.0)            # (M, 2F) f32

    # --- cross_attention head ------------------------------------------------
    prod = zc * z_in                                   # [xd*x_in | yd*y_in]
    xm = prod[:, 0:F]
    mean_abs = jnp.abs(jnp.mean(xm, keepdims=True))    # (1, 1) global mean
    xs = xm / (mean_abs + 1.0e-4)                      # exact scalar reciprocal
    o_ref[...] = jnp.concatenate([xs, prod[:, F:]], axis=-1)


def pack_params(params):
    """One-time host-side repack -- call OUTSIDE the per-forward jit path.
    Weights are bf16-cast and packed into a single (2F, 5F) slab; biases into
    a single (3, 2F) f32 slab.  Reduces 16 tiny per-call DMAs to 2."""
    w1, b1, wp, bp, wq, bq, wc, bc = params
    wpq = jnp.concatenate([wp, wq], axis=0)                         # (2F, F)
    w_packed = jnp.concatenate([w1, wc, wpq], axis=1).astype(jnp.bfloat16)  # (2F, 5F)
    b_packed = jnp.concatenate(
        [b1, jnp.concatenate([bp, bq], axis=1), bc], axis=0
    ).astype(jnp.float32)                                           # (3, 2F)
    return w_packed, b_packed


@jax.jit
def cross_attention_forward(x, y, w_packed, b_packed):
    """x, y: (B, C, H, F) float32.  Returns (x_out, y_out), same shape."""
    B, C, H, F = x.shape
    M = B * C * H
    z = jnp.concatenate([x.reshape(M, F), y.reshape(M, F)], axis=-1)  # (M, 2F)

    vmem = pl.BlockSpec(memory_space=pltpu.MemorySpace.VMEM)
    out = pl.pallas_call(
        cross_attention_kernel,
        out_shape=jax.ShapeDtypeStruct((M, 2 * F), jnp.float32),
        in_specs=[vmem, vmem, vmem],
        out_specs=vmem,
    )(z, w_packed, b_packed)

    return out[:, :F].reshape(B, C, H, F), out[:, F:].reshape(B, C, H, F)


def init_params(key, F):
    """Deterministic synthetic parameters.  Weights stored as (in, out) so the
    kernel computes z @ W + b (equivalent to torch's x @ W.T + b)."""
    ks = jax.random.split(key, 8)
    s = 0.05
    w1 = s * jax.random.normal(ks[0], (2 * F, 2 * F), jnp.float32)
    b1 = s * jax.random.normal(ks[1], (1, 2 * F), jnp.float32)
    wp = s * jax.random.normal(ks[2], (F, F), jnp.float32)
    bp = s * jax.random.normal(ks[3], (1, F), jnp.float32)
    wq = s * jax.random.normal(ks[4], (F, F), jnp.float32)
    bq = s * jax.random.normal(ks[5], (1, F), jnp.float32)
    wc = s * jax.random.normal(ks[6], (2 * F, 2 * F), jnp.float32)
    bc = s * jax.random.normal(ks[7], (1, 2 * F), jnp.float32)
    return (w1, b1, wp, bp, wq, bq, wc, bc)


def reference_forward(x, y, params):
    """Plain-JAX reference mirroring the PyTorch forward (eval mode), using
    the same bf16 operand / f32 accumulation quantization and the same K=2F
    contraction structure as the kernel, so the comparison is tight."""
    w1, b1, wp, bp, wq, bq, wc, bc = params
    F = x.shape[-1]
    bf = jnp.bfloat16

    def dotq(a, w):
        return jnp.dot(a.astype(bf), w.astype(bf),
                       preferred_element_type=jnp.float32)

    x1, y1 = x, y
    z = jnp.concatenate([x, y], axis=-1)
    for _ in range(2):
        z = jnp.maximum(dotq(z, w1) + b1[0], 0.0)
    zx, zy = z[..., :F], z[..., F:]
    xp = jnp.maximum(dotq(zx, wp) + bp[0], 0.0)
    yq = jnp.maximum(dotq(zy, wq) + bq[0], 0.0)
    z2 = jnp.maximum(dotq(jnp.concatenate([xp, yq], axis=-1), wc) + bc[0], 0.0)
    xd, yd = z2[..., :F], z2[..., F:]
    xm = xd * x1
    x_mean = jnp.abs(jnp.mean(xm))
    return xm / (x_mean + 1.0e-4), yd * y1


if __name__ == "__main__":
    # size_features = 128 (feature axis = lanes); M = B*C*H = 128 rows.
    B, C, H, F = 2, 4, 16, 128

    key = jax.random.PRNGKey(0)
    kx, ky, kp = jax.random.split(key, 3)
    x = jax.random.normal(kx, (B, C, H, F), jnp.float32)
    y = jax.random.normal(ky, (B, C, H, F), jnp.float32)
    params = init_params(kp, F)

    # Host-side one-time repack (hoisted out of the jitted per-call path).
    w_packed, b_packed = pack_params(params)
    jax.block_until_ready((w_packed, b_packed))

    x_out, y_out = cross_attention_forward(x, y, w_packed, b_packed)
    jax.block_until_ready((x_out, y_out))

    # Validate against the bf16-matched plain-JAX reference.  With identical
    # contraction structure + exact reciprocal, observed deltas are ~1e-6;
    # the tolerance below leaves margin for accumulation-order differences.
    x_ref, y_ref = reference_forward(x, y, params)
    np.testing.assert_allclose(np.asarray(x_out), np.asarray(x_ref),
                               rtol=1e-2, atol=1e-2)
    np.testing.assert_allclose(np.asarray(y_out), np.asarray(y_ref),
                               rtol=1e-2, atol=1e-2)

    print("KERNEL_OK")
</pallas_src>

<mosaic_0001>
module attributes {stable_mosaic.version = 11 : i64} {
  func.func @cross_attention_kernel(%arg0: memref<128x256xf32, #tpu.memory_space<vmem>>, %arg1: memref<256x640xbf16, #tpu.memory_space<vmem>>, %arg2: memref<3x256xf32, #tpu.memory_space<vmem>>, %arg3: memref<128x256xf32, #tpu.memory_space<vmem>>) attributes {dimension_semantics = [], scalar_prefetch = 0 : i64, scratch_operands = 0 : i64, tpu.core_type = #tpu.core_type<tc>} {
    %c0 = arith.constant 0 : index
    %c0_0 = arith.constant 0 : index
    %0 = vector.load %arg0[%c0, %c0_0] : memref<128x256xf32, #tpu.memory_space<vmem>>, vector<128x256xf32>
    %c0_1 = arith.constant 0 : index
    %c0_2 = arith.constant 0 : index
    %1 = vector.load %arg1[%c0_1, %c0_2] : memref<256x640xbf16, #tpu.memory_space<vmem>>, vector<256x256xbf16>
    %c0_3 = arith.constant 0 : index
    %c256 = arith.constant 256 : index
    %2 = vector.load %arg1[%c0_3, %c256] : memref<256x640xbf16, #tpu.memory_space<vmem>>, vector<256x256xbf16>
    %c0_4 = arith.constant 0 : index
    %c512 = arith.constant 512 : index
    %3 = vector.load %arg1[%c0_4, %c512] : memref<256x640xbf16, #tpu.memory_space<vmem>>, vector<128x128xbf16>
    %c128 = arith.constant 128 : index
    %c512_5 = arith.constant 512 : index
    %4 = vector.load %arg1[%c128, %c512_5] : memref<256x640xbf16, #tpu.memory_space<vmem>>, vector<128x128xbf16>
    %c0_6 = arith.constant 0 : index
    %c0_7 = arith.constant 0 : index
    %5 = vector.load %arg2[%c0_6, %c0_7] : memref<3x256xf32, #tpu.memory_space<vmem>>, vector<1x256xf32>
    %c1 = arith.constant 1 : index
    %c0_8 = arith.constant 0 : index
    %6 = vector.load %arg2[%c1, %c0_8] : memref<3x256xf32, #tpu.memory_space<vmem>>, vector<1x256xf32>
    %c2 = arith.constant 2 : index
    %c0_9 = arith.constant 0 : index
    %7 = vector.load %arg2[%c2, %c0_9] : memref<3x256xf32, #tpu.memory_space<vmem>>, vector<1x256xf32>
    %8 = arith.truncf %0 : vector<128x256xf32> to vector<128x256xbf16>
    %cst = arith.constant dense<0.000000e+00> : vector<128x256xf32>
    %9 = tpu.matmul %8, %1, %cst {dimension_numbers = #tpu.dot_dimension_numbers<[1], [0], [0], [1], [0, 0, 1, 1], [], []>} : vector<128x256xbf16>, vector<256x256xbf16>, vector<128x256xf32> -> vector<128x256xf32>
    %10 = vector.broadcast %5 : vector<1x256xf32> to vector<128x256xf32>
    %11 = arith.addf %9, %10 : vector<128x256xf32>
    %cst_10 = arith.constant 0.000000e+00 : f32
    %12 = vector.broadcast %cst_10 : f32 to vector<128x256xf32>
    %13 = arith.maximumf %11, %12 : vector<128x256xf32>
    %14 = arith.truncf %13 : vector<128x256xf32> to vector<128x256xbf16>
    %cst_11 = arith.constant dense<0.000000e+00> : vector<128x256xf32>
    %15 = tpu.matmul %14, %1, %cst_11 {dimension_numbers = #tpu.dot_dimension_numbers<[1], [0], [0], [1], [0, 0, 1, 1], [], []>} : vector<128x256xbf16>, vector<256x256xbf16>, vector<128x256xf32> -> vector<128x256xf32>
    %16 = vector.broadcast %5 : vector<1x256xf32> to vector<128x256xf32>
    %17 = arith.addf %15, %16 : vector<128x256xf32>
    %cst_12 = arith.constant 0.000000e+00 : f32
    %18 = vector.broadcast %cst_12 : f32 to vector<128x256xf32>
    %19 = arith.maximumf %17, %18 : vector<128x256xf32>
    %20 = arith.truncf %19 : vector<128x256xf32> to vector<128x256xbf16>
    %21 = vector.extract_strided_slice %20 {offsets = [0, 0], sizes = [128, 128], strides = [1, 1]} : vector<128x256xbf16> to vector<128x128xbf16>
    %cst_13 = arith.constant dense<0.000000e+00> : vector<128x128xf32>
    %22 = tpu.matmul %21, %3, %cst_13 {dimension_numbers = #tpu.dot_dimension_numbers<[1], [0], [0], [1], [0, 0, 1, 1], [], []>} : vector<128x128xbf16>, vector<128x128xbf16>, vector<128x128xf32> -> vector<128x128xf32>
    %23 = vector.extract_strided_slice %20 {offsets = [0, 128], sizes = [128, 128], strides = [1, 1]} : vector<128x256xbf16> to vector<128x128xbf16>
    %cst_14 = arith.constant dense<0.000000e+00> : vector<128x128xf32>
    %24 = tpu.matmul %23, %4, %cst_14 {dimension_numbers = #tpu.dot_dimension_numbers<[1], [0], [0], [1], [0, 0, 1, 1], [], []>} : vector<128x128xbf16>, vector<128x128xbf16>, vector<128x128xf32> -> vector<128x128xf32>
    %25 = tpu.concatenate %22, %24 in 1 : vector<128x128xf32>, vector<128x128xf32> -> vector<128x256xf32>
    %26 = vector.broadcast %6 : vector<1x256xf32> to vector<128x256xf32>
    %27 = arith.addf %25, %26 : vector<128x256xf32>
    %cst_15 = arith.constant 0.000000e+00 : f32
    %28 = vector.broadcast %cst_15 : f32 to vector<128x256xf32>
    %29 = arith.maximumf %27, %28 : vector<128x256xf32>
    %30 = arith.truncf %29 : vector<128x256xf32> to vector<128x256xbf16>
    %cst_16 = arith.constant dense<0.000000e+00> : vector<128x256xf32>
    %31 = tpu.matmul %30, %2, %cst_16 {dimension_numbers = #tpu.dot_dimension_numbers<[1], [0], [0], [1], [0, 0, 1, 1], [], []>} : vector<128x256xbf16>, vector<256x256xbf16>, vector<128x256xf32> -> vector<128x256xf32>
    %32 = vector.broadcast %7 : vector<1x256xf32> to vector<128x256xf32>
    %33 = arith.addf %31, %32 : vector<128x256xf32>
    %cst_17 = arith.constant 0.000000e+00 : f32
    %34 = vector.broadcast %cst_17 : f32 to vector<128x256xf32>
    %35 = arith.maximumf %33, %34 : vector<128x256xf32>
    %36 = arith.mulf %35, %0 : vector<128x256xf32>
    %37 = vector.extract_strided_slice %36 {offsets = [0, 0], sizes = [128, 128], strides = [1, 1]} : vector<128x256xf32> to vector<128x128xf32>
    %38 = vector.shape_cast %37 : vector<128x128xf32> to vector<1x128x128xf32>
    %cst_18 = arith.constant dense<0.000000e+00> : vector<1xf32>
    %39 = vector.multi_reduction <add>, %38, %cst_18 [1, 2] : vector<1x128x128xf32> to vector<1xf32>
    %40 = vector.shape_cast %39 : vector<1xf32> to vector<1x1x1xf32>
    %41 = vector.extract %40[0, 0, 0] : f32 from vector<1x1x1xf32>
    %42 = vector.broadcast %41 : f32 to vector<1x1xf32>
    %cst_19 = arith.constant 1.638400e+04 : f32
    %43 = vector.broadcast %cst_19 : f32 to vector<1x1xf32>
    %44 = arith.divf %42, %43 : vector<1x1xf32>
    %45 = math.absf %44 : vector<1x1xf32>
    %cst_20 = arith.constant 9.99999974E-5 : f32
    %46 = vector.broadcast %cst_20 : f32 to vector<1x1xf32>
    %47 = arith.addf %45, %46 : vector<1x1xf32>
    %48 = vector.broadcast %47 : vector<1x1xf32> to vector<128x128xf32>
    %49 = arith.divf %37, %48 : vector<128x128xf32>
    %50 = vector.extract_strided_slice %36 {offsets = [0, 128], sizes = [128, 128], strides = [1, 1]} : vector<128x256xf32> to vector<128x128xf32>
    %51 = tpu.concatenate %49, %50 in 1 : vector<128x128xf32>, vector<128x128xf32> -> vector<128x256xf32>
    %c0_21 = arith.constant 0 : index
    %c0_22 = arith.constant 0 : index
    %52 = vector.load %arg3[%c0_21, %c0_22] : memref<128x256xf32, #tpu.memory_space<vmem>>, vector<128x256xf32>
    tpu.vector_store %arg3[%c0_21, %c0_22], %51 {strides = array<i32>} : memref<128x256xf32, #tpu.memory_space<vmem>>, vector<128x256xf32>,
    return
  }
}

</mosaic_0001>

<llo_original>
// kernel: cross_attention_forward.1
$region0: #{cross_attention_forward.1}
  #allocation0 [shape = 'u32[]', space=smem, size = 0x4, offset = 0x4, fixed_abs, tag = 'smem constant byte address 0x4 - core index']
  #allocation1 [shape = 'u32[144,128]{1,0:T(1,128)}', space=vmem, size = 0x12000, scoped, tag = 'internal scratch']
  %s0 = inlined_call_operand.vmem [shape: f32[128,256], index: 0, kind: input, shape index: {}]
  %s1 = inlined_call_operand.hbm [shape: bf16[256,640], index: 1, kind: input, shape index: {}]
  %s2 = inlined_call_operand.vmem [shape: f32[3,256], index: 2, kind: input, shape index: {}]
  %s3 = inlined_call_operand.vmem [shape: f32[128,256], index: 3, kind: output, shape index: {}]
  %s4 = sld [smem:[#allocation0]]
  $region26: #{cross_attention_forward.1} parent=0
    _
  %s6 = ssub.s32 1, %s4
  %s7 = scalar_select 0, %s6, %s4
  $region1: #{cross_attention_forward.1} parent=0
    #allocation2 [shape = 'u8[327680]{0}', space=vmem, size = 0x50000, scoped, tag = 'input window, operand 1, single buffered']
    #allocation3 [shape = 's32[1]{0}', space=sflag, size = 0x4, scoped, tag = 'scoped memory for cross_attention_forward.1']
    %8 = vsyncpa [#allocation3], 0
    // Predicated region
    $region2: #{cross_attention_forward.1} parent=1 // pred_check
      _
    $region3: #{cross_attention_forward.1} parent=1 // pred_check_branch
      %10 = sbr.rel (0) target = $region5
    $region4: #{cross_attention_forward.1} parent=1 // pred_region
      _
    $region5: #{cross_attention_forward.1} parent=1 // pred_fallthru
      _
    // Predicated region
    $region6: #{cross_attention_forward.1} parent=1 // pred_check
      _
    $region7: #{cross_attention_forward.1} parent=1 // pred_check_branch
      %12 = sbr.rel (0) target = $region9
    $region8: #{cross_attention_forward.1} parent=1 // pred_region
      %s14 = ssub.s32 10240, 10240
      %15 = vsyncadd [#allocation3], %s14
      %s16 = sshll.u32 [#allocation2], 4
      %s17 = int_to_ptr.vmem [resolvable:$true] %s16
      %22 = dma.hbm_to_vmem [thread:$0]  %s1, 10240, %s17, [#allocation3], 320, 320, 20
    $region9: #{cross_attention_forward.1} parent=1 // pred_fallthru
      _
    // Predicated region
    $region10: #{cross_attention_forward.1} parent=1 // pred_check
      _
    $region11: #{cross_attention_forward.1} parent=1 // pred_check_branch
      %24 = sbr.rel (0) target = $region13
    $region12: #{cross_attention_forward.1} parent=1 // pred_region
      _
    $region13: #{cross_attention_forward.1} parent=1 // pred_fallthru
      _
    // Predicated region
    $region14: #{cross_attention_forward.1} parent=1 // pred_check
      _
    $region15: #{cross_attention_forward.1} parent=1 // pred_check_branch
      %26 = sbr.rel (0) target = $region17
    $region16: #{cross_attention_forward.1} parent=1 // pred_region
      %27 = dma.done [#allocation3], 10240
    $region17: #{cross_attention_forward.1} parent=1 // pred_fallthru
      _
    %v29 = vld [vmem:[%s0] sm:$0xff]
    %v30 = vld [vmem:[%s0 + $0x8] sm:$0xff]
    %v31 = vld [vmem:[%s0 + $0x10] sm:$0xff]
    %v32 = vld [vmem:[%s0 + $0x18] sm:$0xff]
    %v33 = vld [vmem:[%s0 + $0x20] sm:$0xff]
    %v34 = vld [vmem:[%s0 + $0x28] sm:$0xff]
    %v35 = vld [vmem:[%s0 + $0x30] sm:$0xff]
    %v36 = vld [vmem:[%s0 + $0x38] sm:$0xff]
    %v37 = vld [vmem:[%s0 + $0x40] sm:$0xff]
    %v38 = vld [vmem:[%s0 + $0x48] sm:$0xff]
    %v39 = vld [vmem:[%s0 + $0x50] sm:$0xff]
    %v40 = vld [vmem:[%s0 + $0x58] sm:$0xff]
    %v41 = vld [vmem:[%s0 + $0x60] sm:$0xff]
    %v42 = vld [vmem:[%s0 + $0x68] sm:$0xff]
    %v43 = vld [vmem:[%s0 + $0x70] sm:$0xff]
    %v44 = vld [vmem:[%s0 + $0x78] sm:$0xff]
    %v45 = vld [vmem:[%s0 + $0x80] sm:$0xff]
    %v46 = vld [vmem:[%s0 + $0x88] sm:$0xff]
    %v47 = vld [vmem:[%s0 + $0x90] sm:$0xff]
    %v48 = vld [vmem:[%s0 + $0x98] sm:$0xff]
    %v49 = vld [vmem:[%s0 + $0xa0] sm:$0xff]
    %v50 = vld [vmem:[%s0 + $0xa8] sm:$0xff]
    %v51 = vld [vmem:[%s0 + $0xb0] sm:$0xff]
    %v52 = vld [vmem:[%s0 + $0xb8] sm:$0xff]
    %v53 = vld [vmem:[%s0 + $0xc0] sm:$0xff]
    %v54 = vld [vmem:[%s0 + $0xc8] sm:$0xff]
    %v55 = vld [vmem:[%s0 + $0xd0] sm:$0xff]
    %v56 = vld [vmem:[%s0 + $0xd8] sm:$0xff]
    %v57 = vld [vmem:[%s0 + $0xe0] sm:$0xff]
    %v58 = vld [vmem:[%s0 + $0xe8] sm:$0xff]
    %v59 = vld [vmem:[%s0 + $0xf0] sm:$0xff]
    %v60 = vld [vmem:[%s0 + $0xf8] sm:$0xff]
    %v61 = vld [vmem:[#allocation2] sm:$0xff]
    %v62 = vld [vmem:[#allocation2 + $0x14] sm:$0xff]
    %v63 = vld [vmem:[#allocation2 + $0x28] sm:$0xff]
    %v64 = vld [vmem:[#allocation2 + $0x3c] sm:$0xff]
    %v65 = vld [vmem:[#allocation2 + $0x50] sm:$0xff]
    %v66 = vld [vmem:[#allocation2 + $0x64] sm:$0xff]
    %v67 = vld [vmem:[#allocation2 + $0x78] sm:$0xff]
    %v68 = vld [vmem:[#allocation2 + $0x8c] sm:$0xff]
    %v69 = vld [vmem:[#allocation2 + $0xa0] sm:$0xff]
    %v70 = vld [vmem:[#allocation2 + $0xb4] sm:$0xff]
    %v71 = vld [vmem:[#allocation2 + $0xc8] sm:$0xff]
    %v72 = vld [vmem:[#allocation2 + $0xdc] sm:$0xff]
    %v73 = vld [vmem:[#allocation2 + $0xf0] sm:$0xff]
    %v74 = vld [vmem:[#allocation2 + $0x104] sm:$0xff]
    %v75 = vld [vmem:[#allocation2 + $0x118] sm:$0xff]
    %v76 = vld [vmem:[#allocation2 + $0x12c] sm:$0xff]
    %v77 = vld [vmem:[#allocation2 + $0x140] sm:$0xff]
    %v78 = vld [vmem:[#allocation2 + $0x154] sm:$0xff]
    %v79 = vld [vmem:[#allocation2 + $0x168] sm:$0xff]
    %v80 = vld [vmem:[#allocation2 + $0x17c] sm:$0xff]
    %v81 = vld [vmem:[#allocation2 + $0x190] sm:$0xff]
    %v82 = vld [vmem:[#allocation2 + $0x1a4] sm:$0xff]
    %v83 = vld [vmem:[#allocation2 + $0x1b8] sm:$0xff]
    %v84 = vld [vmem:[#allocation2 + $0x1cc] sm:$0xff]
    %v85 = vld [vmem:[#allocation2 + $0x1e0] sm:$0xff]
    %v86 = vld [vmem:[#allocation2 + $0x1f4] sm:$0xff]
    %v87 = vld [vmem:[#allocation2 + $0x208] sm:$0xff]
    %v88 = vld [vmem:[#allocation2 + $0x21c] sm:$0xff]
    %v89 = vld [vmem:[#allocation2 + $0x230] sm:$0xff]
    %v90 = vld [vmem:[#allocation2 + $0x244] sm:$0xff]
    %v91 = vld [vmem:[#allocation2 + $0x258] sm:$0xff]
    %v92 = vld [vmem:[#allocation2 + $0x26c] sm:$0xff]
    %v93 = vld [vmem:[#allocation2 + $0x8] sm:$0xff]
    %v94 = vld [vmem:[#allocation2 + $0x1c] sm:$0xff]
    %v95 = vld [vmem:[#allocation2 + $0x30] sm:$0xff]
    %v96 = vld [vmem:[#allocation2 + $0x44] sm:$0xff]
    %v97 = vld [vmem:[#allocation2 + $0x58] sm:$0xff]
    %v98 = vld [vmem:[#allocation2 + $0x6c] sm:$0xff]
    %v99 = vld [vmem:[#allocation2 + $0x80] sm:$0xff]
    %v100 = vld [vmem:[#allocation2 + $0x94] sm:$0xff]
    %v101 = vld [vmem:[#allocation2 + $0xa8] sm:$0xff]
    %v102 = vld [vmem:[#allocation2 + $0xbc] sm:$0xff]
    %v103 = vld [vmem:[#allocation2 + $0xd0] sm:$0xff]
    %v104 = vld [vmem:[#allocation2 + $0xe4] sm:$0xff]
    %v105 = vld [vmem:[#allocation2 + $0xf8] sm:$0xff]
    %v106 = vld [vmem:[#allocation2 + $0x10c] sm:$0xff]
    %v107 = vld [vmem:[#allocation2 + $0x120] sm:$0xff]
    %v108 = vld [vmem:[#allocation2 + $0x134] sm:$0xff]
    %v109 = vld [vmem:[#allocation2 + $0x148] sm:$0xff]
    %v110 = vld [vmem:[#allocation2 + $0x15c] sm:$0xff]
    %v111 = vld [vmem:[#allocation2 + $0x170] sm:$0xff]
    %v112 = vld [vmem:[#allocation2 + $0x184] sm:$0xff]
    %v113 = vld [vmem:[#allocation2 + $0x198] sm:$0xff]
    %v114 = vld [vmem:[#allocation2 + $0x1ac] sm:$0xff]
    %v115 = vld [vmem:[#allocation2 + $0x1c0] sm:$0xff]
    %v116 = vld [vmem:[#allocation2 + $0x1d4] sm:$0xff]
    %v117 = vld [vmem:[#allocation2 + $0x1e8] sm:$0xff]
    %v118 = vld [vmem:[#allocation2 + $0x1fc] sm:$0xff]
    %v119 = vld [vmem:[#allocation2 + $0x210] sm:$0xff]
    %v120 = vld [vmem:[#allocation2 + $0x224] sm:$0xff]
    %v121 = vld [vmem:[#allocation2 + $0x238] sm:$0xff]
    %v122 = vld [vmem:[#allocation2 + $0x24c] sm:$0xff]
    %v123 = vld [vmem:[#allocation2 + $0x260] sm:$0xff]
    %v124 = vld [vmem:[#allocation2 + $0x274] sm:$0xff]
    %v125 = vld [vmem:[#allocation2 + $0x10] sm:$0xf]
    %v126 = vld [vmem:[#allocation2 + $0x24] sm:$0xf]
    %v127 = vld [vmem:[#allocation2 + $0x38] sm:$0xf]
    %v128 = vld [vmem:[#allocation2 + $0x4c] sm:$0xf]
    %v129 = vld [vmem:[#allocation2 + $0x60] sm:$0xf]
    %v130 = vld [vmem:[#allocation2 + $0x74] sm:$0xf]
    %v131 = vld [vmem:[#allocation2 + $0x88] sm:$0xf]
    %v132 = vld [vmem:[#allocation2 + $0x9c] sm:$0xf]
    %v133 = vld [vmem:[#allocation2 + $0xb0] sm:$0xf]
    %v134 = vld [vmem:[#allocation2 + $0xc4] sm:$0xf]
    %v135 = vld [vmem:[#allocation2 + $0xd8] sm:$0xf]
    %v136 = vld [vmem:[#allocation2 + $0xec] sm:$0xf]
    %v137 = vld [vmem:[#allocation2 + $0x100] sm:$0xf]
    %v138 = vld [vmem:[#allocation2 + $0x114] sm:$0xf]
    %v139 = vld [vmem:[#allocation2 + $0x128] sm:$0xf]
    %v140 = vld [vmem:[#allocation2 + $0x13c] sm:$0xf]
    %v141 = vld [vmem:[#allocation2 + $0x150] sm:$0xf]
    %v142 = vld [vmem:[#allocation2 + $0x164] sm:$0xf]
    %v143 = vld [vmem:[#allocation2 + $0x178] sm:$0xf]
    %v144 = vld [vmem:[#allocation2 + $0x18c] sm:$0xf]
    %v145 = vld [vmem:[#allocation2 + $0x1a0] sm:$0xf]
    %v146 = vld [vmem:[#allocation2 + $0x1b4] sm:$0xf]
    %v147 = vld [vmem:[#allocation2 + $0x1c8] sm:$0xf]
    %v148 = vld [vmem:[#allocation2 + $0x1dc] sm:$0xf]
    %v149 = vld [vmem:[#allocation2 + $0x1f0] sm:$0xf]
    %v150 = vld [vmem:[#allocation2 + $0x204] sm:$0xf]
    %v151 = vld [vmem:[#allocation2 + $0x218] sm:$0xf]
    %v152 = vld [vmem:[#allocation2 + $0x22c] sm:$0xf]
    %v153 = vld [vmem:[#allocation2 + $0x240] sm:$0xf]
    %v154 = vld [vmem:[#allocation2 + $0x254] sm:$0xf]
    %v155 = vld [vmem:[#allocation2 + $0x268] sm:$0xf]
    %v156 = vld [vmem:[#allocation2 + $0x27c] sm:$0xf]
    %v157 = vld [vmem:[%s2] ss:$4 sm:$0x3]
    %s158 = scalar_lea.vmem %s2, 1
    %v159 = vld [vmem:[%s158] ss:$4 sm:$0x3]
    %s160 = scalar_lea.vmem %s2, 2
    %v161 = vld [vmem:[%s160] ss:$4 sm:$0x3]
    %v162 = vpack.c.bf16 %v31, %v29
    %v163 = vpack.c.bf16 %v32, %v30
    %v164 = vpack.c.bf16 %v35, %v33
    %v165 = vpack.c.bf16 %v36, %v34
    %v166 = vpack.c.bf16 %v39, %v37
    %v167 = vpack.c.bf16 %v40, %v38
    %v168 = vpack.c.bf16 %v43, %v41
    %v169 = vpack.c.bf16 %v44, %v42
    %v170 = vpack.c.bf16 %v47, %v45
    %v171 = vpack.c.bf16 %v48, %v46
    %v172 = vpack.c.bf16 %v51, %v49
    %v173 = vpack.c.bf16 %v52, %v50
    %v174 = vpack.c.bf16 %v55, %v53
    %v175 = vpack.c.bf16 %v56, %v54
    %v176 = vpack.c.bf16 %v59, %v57
    %v177 = vpack.c.bf16 %v60, %v58
    %v179 = vlaneseq
    %v180 = vshrl.u32 %v179, 7
    %v181 = vsub.s32 0, %v180
    %v182 = vrot.slane %v157, %v181
    %v183 = vlaneseq
    %v184 = vshrl.u32 %v183, 7
    %v185 = vsub.s32 1, %v184
    %v186 = vrot.slane %v157, %v185
    %v221 = vunpack.c.l.b16 %v61
    %v222 = vunpack.c.h.b16 %v61
    %v223 = vunpack.c.l.b16 %v62
    %v224 = vunpack.c.h.b16 %v62
    %v225 = vunpack.c.l.b16 %v63
    %v226 = vunpack.c.h.b16 %v63
    %v227 = vunpack.c.l.b16 %v64
    %v228 = vunpack.c.h.b16 %v64
    %v229 = vunpack.c.l.b16 %v65
    %v230 = vunpack.c.h.b16 %v65
    %v231 = vunpack.c.l.b16 %v66
    %v232 = vunpack.c.h.b16 %v66
    %v233 = vunpack.c.l.b16 %v67
    %v234 = vunpack.c.h.b16 %v67
    %v235 = vunpack.c.l.b16 %v68
    %v236 = vunpack.c.h.b16 %v68
    %v237 = vunpack.c.l.b16 %v69
    %v238 = vunpack.c.h.b16 %v69
    %v239 = vunpack.c.l.b16 %v70
    %v240 = vunpack.c.h.b16 %v70
    %v241 = vunpack.c.l.b16 %v71
    %v242 = vunpack.c.h.b16 %v71
    %v243 = vunpack.c.l.b16 %v72
    %v244 = vunpack.c.h.b16 %v72
    %v245 = vunpack.c.l.b16 %v73
    %v246 = vunpack.c.h.b16 %v73
    %v247 = vunpack.c.l.b16 %v74
    %v248 = vunpack.c.h.b16 %v74
    %v249 = vunpack.c.l.b16 %v75
    %v250 = vunpack.c.h.b16 %v75
    %v251 = vunpack.c.l.b16 %v76
    %v252 = vunpack.c.h.b16 %v76
    %v253 = vunpack.c.l.b16 %v77
    %v254 = vunpack.c.h.b16 %v77
    %v255 = vunpack.c.l.b16 %v78
    %v256 = vunpack.c.h.b16 %v78
    %v257 = vunpack.c.l.b16 %v79
    %v258 = vunpack.c.h.b16 %v79
    %v259 = vunpack.c.l.b16 %v80
    %v260 = vunpack.c.h.b16 %v80
    %v261 = vunpack.c.l.b16 %v81
    %v262 = vunpack.c.h.b16 %v81
    %v263 = vunpack.c.l.b16 %v82
    %v264 = vunpack.c.h.b16 %v82
    %v265 = vunpack.c.l.b16 %v83
    %v266 = vunpack.c.h.b16 %v83
    %v267 = vunpack.c.l.b16 %v84
    %v268 = vunpack.c.h.b16 %v84
    %v269 = vunpack.c.l.b16 %v85
    %v270 = vunpack.c.h.b16 %v85
    %v271 = vunpack.c.l.b16 %v86
    %v272 = vunpack.c.h.b16 %v86
    %v273 = vunpack.c.l.b16 %v87
    %v274 = vunpack.c.h.b16 %v87
    %v275 = vunpack.c.l.b16 %v88
    %v276 = vunpack.c.h.b16 %v88
    %v277 = vunpack.c.l.b16 %v89
    %v278 = vunpack.c.h.b16 %v89
    %v279 = vunpack.c.l.b16 %v90
    %v280 = vunpack.c.h.b16 %v90
    %v281 = vunpack.c.l.b16 %v91
    %v282 = vunpack.c.h.b16 %v91
    %v283 = vunpack.c.l.b16 %v92
    %v284 = vunpack.c.h.b16 %v92
    %v285 = vpack.c.b16 %v223, %v221
    %v286 = vpack.c.b16 %v224, %v222
    %v287 = vpack.c.b16 %v227, %v225
    %v288 = vpack.c.b16 %v228, %v226
    %v289 = vpack.c.b16 %v231, %v229
    %v290 = vpack.c.b16 %v232, %v230
    %v291 = vpack.c.b16 %v235, %v233
    %v292 = vpack.c.b16 %v236, %v234
    %v293 = vpack.c.b16 %v239, %v237
    %v294 = vpack.c.b16 %v240, %v238
    %v295 = vpack.c.b16 %v243, %v241
    %v296 = vpack.c.b16 %v244, %v242
    %v297 = vpack.c.b16 %v247, %v245
    %v298 = vpack.c.b16 %v248, %v246
    %v299 = vpack.c.b16 %v251, %v249
    %v300 = vpack.c.b16 %v252, %v250
    %v301 = vpack.c.b16 %v255, %v253
    %v302 = vpack.c.b16 %v256, %v254
    %v303 = vpack.c.b16 %v259, %v257
    %v304 = vpack.c.b16 %v260, %v258
    %v305 = vpack.c.b16 %v263, %v261
    %v306 = vpack.c.b16 %v264, %v262
    %v307 = vpack.c.b16 %v267, %v265
    %v308 = vpack.c.b16 %v268, %v266
    %v309 = vpack.c.b16 %v271, %v269
    %v310 = vpack.c.b16 %v272, %v270
    %v311 = vpack.c.b16 %v275, %v273
    %v312 = vpack.c.b16 %v276, %v274
    %v313 = vpack.c.b16 %v279, %v277
    %v314 = vpack.c.b16 %v280, %v278
    %v315 = vpack.c.b16 %v283, %v281
    %v316 = vpack.c.b16 %v284, %v282
    %349 = vmatprep.subr.bf16.mxu0 %v286
    %350 = vmatpush1.bf16.msra.mxu0 %v285
    %351 = vmatprep.subr.bf16.mxu0 %v288
    %352 = vmatpush1.bf16.msra.mxu0 %v287
    %353 = vmatprep.subr.bf16.mxu0 %v290
    %354 = vmatpush1.bf16.msra.mxu0 %v289
    %355 = vmatprep.subr.bf16.mxu0 %v292
    %356 = vmatpush1.bf16.msra.mxu0 %v291
    %357 = vmatprep.subr.bf16.mxu0 %v294
    %358 = vmatpush1.bf16.msra.mxu0 %v293
    %359 = vmatprep.subr.bf16.mxu0 %v296
    %360 = vmatpush1.bf16.msra.mxu0 %v295
    %361 = vmatprep.subr.bf16.mxu0 %v298
    %362 = vmatpush1.bf16.msra.mxu0 %v297
    %363 = vmatprep.subr.bf16.mxu0 %v300
    %364 = vmatpush1.bf16.msra.mxu0 %v299
    %365 = vmatprep.subr.bf16.mxu0 %v302
    %366 = vmatpush1.bf16.msra.mxu0 %v301
    %367 = vmatprep.subr.bf16.mxu0 %v304
    %368 = vmatpush1.bf16.msra.mxu0 %v303
    %369 = vmatprep.subr.bf16.mxu0 %v306
    %370 = vmatpush1.bf16.msra.mxu0 %v305
    %371 = vmatprep.subr.bf16.mxu0 %v308
    %372 = vmatpush1.bf16.msra.mxu0 %v307
    %373 = vmatprep.subr.bf16.mxu0 %v310
    %374 = vmatpush1.bf16.msra.mxu0 %v309
    %375 = vmatprep.subr.bf16.mxu0 %v312
    %376 = vmatpush1.bf16.msra.mxu0 %v311
    %377 = vmatprep.subr.bf16.mxu0 %v314
    %378 = vmatpush1.bf16.msra.mxu0 %v313
    %379 = vmatprep.subr.bf16.mxu0 %v316
    %380 = vmatpush1.bf16.msra.mxu0 %v315
    %381 = vmatprep.mubr.bf16.mxu0 %v163
    %382 = vmatmul.mubr.bf16.gmra.mrb[0].mxu0 %v162
    %v383 = vpop.f32.mrb[0].mxu0
    %v384 = vadd.f32 %v182, %v383
    %v385 = vpop.f32.mrb[0].mxu0
    %v386 = vadd.f32 %v186, %v385
    %v387 = vpop.f32.mrb[0].mxu0
    %v388 = vadd.f32 %v182, %v387
    %v389 = vpop.f32.mrb[0].mxu0
    %v390 = vadd.f32 %v186, %v389
    %391 = vmatprep.mubr.bf16.mxu0 %v165
    %392 = vmatmul.mubr.bf16.gmra.mrb[0].mxu0 %v164
    %v393 = vpop.f32.mrb[0].mxu0
    %v394 = vadd.f32 %v182, %v393
    %v395 = vpop.f32.mrb[0].mxu0
    %v396 = vadd.f32 %v186, %v395
    %v397 = vpop.f32.mrb[0].mxu0
    %v398 = vadd.f32 %v182, %v397
    %v399 = vpop.f32.mrb[0].mxu0
    %v400 = vadd.f32 %v186, %v399
    %401 = vmatprep.mubr.bf16.mxu0 %v167
    %402 = vmatmul.mubr.bf16.gmra.mrb[0].mxu0 %v166
    %v403 = vpop.f32.mrb[0].mxu0
    %v404 = vadd.f32 %v182, %v403
    %v405 = vpop.f32.mrb[0].mxu0
    %v406 = vadd.f32 %v186, %v405
    %v407 = vpop.f32.mrb[0].mxu0
    %v408 = vadd.f32 %v182, %v407
    %v409 = vpop.f32.mrb[0].mxu0
    %v410 = vadd.f32 %v186, %v409
    %411 = vmatprep.mubr.bf16.mxu0 %v169
    %412 = vmatmul.mubr.bf16.gmra.mrb[0].mxu0 %v168
    %v413 = vpop.f32.mrb[0].mxu0
    %v414 = vadd.f32 %v182, %v413
    %v415 = vpop.f32.mrb[0].mxu0
    %v416 = vadd.f32 %v186, %v415
    %v417 = vpop.f32.mrb[0].mxu0
    %v418 = vadd.f32 %v182, %v417
    %v419 = vpop.f32.mrb[0].mxu0
    %v420 = vadd.f32 %v186, %v419
    %421 = vmatprep.mubr.bf16.mxu0 %v171
    %422 = vmatmul.mubr.bf16.gmra.mrb[0].mxu0 %v170
    %v423 = vpop.f32.mrb[0].mxu0
    %v424 = vadd.f32 %v182, %v423
    %v425 = vpop.f32.mrb[0].mxu0
    %v426 = vadd.f32 %v186, %v425
    %v427 = vpop.f32.mrb[0].mxu0
    %v428 = vadd.f32 %v182, %v427
    %v429 = vpop.f32.mrb[0].mxu0
    %v430 = vadd.f32 %v186, %v429
    %431 = vmatprep.mubr.bf16.mxu0 %v173
    %432 = vmatmul.mubr.bf16.gmra.mrb[0].mxu0 %v172
    %v433 = vpop.f32.mrb[0].mxu0
    %v434 = vadd.f32 %v182, %v433
    %v435 = vpop.f32.mrb[0].mxu0
    %v436 = vadd.f32 %v186, %v435
    %v437 = vpop.f32.mrb[0].mxu0
    %v438 = vadd.f32 %v182, %v437
    %v439 = vpop.f32.mrb[0].mxu0
    %v440 = vadd.f32 %v186, %v439
    %441 = vmatprep.mubr.bf16.mxu0 %v175
    %442 = vmatmul.mubr.bf16.gmra.mrb[0].mxu0 %v174
    %v443 = vpop.f32.mrb[0].mxu0
    %v444 = vadd.f32 %v182, %v443
    %v445 = vpop.f32.mrb[0].mxu0
    %v446 = vadd.f32 %v186, %v445
    %v447 = vpop.f32.mrb[0].mxu0
    %v448 = vadd.f32 %v182, %v447
    %v449 = vpop.f32.mrb[0].mxu0
    %v450 = vadd.f32 %v186, %v449
    %451 = vmatprep.mubr.bf16.mxu0 %v177
    %452 = vmatmul.mubr.bf16.gmra.mrb[0].mxu0 %v176
    %v453 = vpop.f32.mrb[0].mxu0
    %v454 = vadd.f32 %v182, %v453
    %v455 = vpop.f32.mrb[0].mxu0
    %v456 = vadd.f32 %v186, %v455
    %v457 = vpop.f32.mrb[0].mxu0
    %v458 = vadd.f32 %v182, %v457
    %v459 = vpop.f32.mrb[0].mxu0
    %v460 = vadd.f32 %v186, %v459
    %461 = vdwg.mxu0
    %v462 = vmax.f32 %v384, 0.0
    %v463 = vmax.f32 %v386, 0.0
    %v464 = vmax.f32 %v388, 0.0
    %v465 = vmax.f32 %v390, 0.0
    %v466 = vmax.f32 %v394, 0.0
    %v467 = vmax.f32 %v396, 0.0
    %v468 = vmax.f32 %v398, 0.0
    %v469 = vmax.f32 %v400, 0.0
    %v470 = vmax.f32 %v404, 0.0
    %v471 = vmax.f32 %v406, 0.0
    %v472 = vmax.f32 %v408, 0.0
    %v473 = vmax.f32 %v410, 0.0
    %v474 = vmax.f32 %v414, 0.0
    %v475 = vmax.f32 %v416, 0.0
    %v476 = vmax.f32 %v418, 0.0
    %v477 = vmax.f32 %v420, 0.0
    %v478 = vmax.f32 %v424, 0.0
    %v479 = vmax.f32 %v426, 0.0
    %v480 = vmax.f32 %v428, 0.0
    %v481 = vmax.f32 %v430, 0.0
    %v482 = vmax.f32 %v434, 0.0
    %v483 = vmax.f32 %v436, 0.0
    %v484 = vmax.f32 %v438, 0.0
    %v485 = vmax.f32 %v440, 0.0
    %v486 = vmax.f32 %v444, 0.0
    %v487 = vmax.f32 %v446, 0.0
    %v488 = vmax.f32 %v448, 0.0
    %v489 = vmax.f32 %v450, 0.0
    %v490 = vmax.f32 %v454, 0.0
    %v491 = vmax.f32 %v456, 0.0
    %v492 = vmax.f32 %v458, 0.0
    %v493 = vmax.f32 %v460, 0.0
    %v494 = vpack.c.bf16 %v464, %v462
    %v495 = vpack.c.bf16 %v465, %v463
    %v496 = vpack.c.bf16 %v468, %v466
    %v497 = vpack.c.bf16 %v469, %v467
    %v498 = vpack.c.bf16 %v472, %v470
    %v499 = vpack.c.bf16 %v473, %v471
    %v500 = vpack.c.bf16 %v476, %v474
    %v501 = vpack.c.bf16 %v477, %v475
    %v502 = vpack.c.bf16 %v480, %v478
    %v503 = vpack.c.bf16 %v481, %v479
    %v504 = vpack.c.bf16 %v484, %v482
    %v505 = vpack.c.bf16 %v485, %v483
    %v506 = vpack.c.bf16 %v488, %v486
    %v507 = vpack.c.bf16 %v489, %v487
    %v508 = vpack.c.bf16 %v492, %v490
    %v509 = vpack.c.bf16 %v493, %v491
    %510 = vmatprep.subr.bf16.mxu0 %v286
    %511 = vmatpush1.bf16.msra.mxu0 %v285
    %512 = vmatprep.subr.bf16.mxu0 %v288
    %513 = vmatpush1.bf16.msra.mxu0 %v287
    %514 = vmatprep.subr.bf16.mxu0 %v290
    %515 = vmatpush1.bf16.msra.mxu0 %v289
    %516 = vmatprep.subr.bf16.mxu0 %v292
    %517 = vmatpush1.bf16.msra.mxu0 %v291
    %518 = vmatprep.subr.bf16.mxu0 %v294
    %519 = vmatpush1.bf16.msra.mxu0 %v293
    %520 = vmatprep.subr.bf16.mxu0 %v296
    %521 = vmatpush1.bf16.msra.mxu0 %v295
    %522 = vmatprep.subr.bf16.mxu0 %v298
    %523 = vmatpush1.bf16.msra.mxu0 %v297
    %524 = vmatprep.subr.bf16.mxu0 %v300
    %525 = vmatpush1.bf16.msra.mxu0 %v299
    %526 = vmatprep.subr.bf16.mxu0 %v302
    %527 = vmatpush1.bf16.msra.mxu0 %v301
    %528 = vmatprep.subr.bf16.mxu0 %v304
    %529 = vmatpush1.bf16.msra.mxu0 %v303
    %530 = vmatprep.subr.bf16.mxu0 %v306
    %531 = vmatpush1.bf16.msra.mxu0 %v305
    %532 = vmatprep.subr.bf16.mxu0 %v308
    %533 = vmatpush1.bf16.msra.mxu0 %v307
    %534 = vmatprep.subr.bf16.mxu0 %v310
    %535 = vmatpush1.bf16.msra.mxu0 %v309
    %536 = vmatprep.subr.bf16.mxu0 %v312
    %537 = vmatpush1.bf16.msra.mxu0 %v311
    %538 = vmatprep.subr.bf16.mxu0 %v314
    %539 = vmatpush1.bf16.msra.mxu0 %v313
    %540 = vmatprep.subr.bf16.mxu0 %v316
    %541 = vmatpush1.bf16.msra.mxu0 %v315
    %542 = vmatprep.mubr.bf16.mxu0 %v495
    %543 = vmatmul.mubr.bf16.gmra.mrb[0].mxu0 %v494
    %v544 = vpop.f32.mrb[0].mxu0
    %v545 = vadd.f32 %v182, %v544
    %v546 = vpop.f32.mrb[0].mxu0
    %v547 = vadd.f32 %v186, %v546
    %v548 = vpop.f32.mrb[0].mxu0
    %v549 = vadd.f32 %v182, %v548
    %v550 = vpop.f32.mrb[0].mxu0
    %v551 = vadd.f32 %v186, %v550
    %552 = vmatprep.mubr.bf16.mxu0 %v497
    %553 = vmatmul.mubr.bf16.gmra.mrb[0].mxu0 %v496
    %v554 = vpop.f32.mrb[0].mxu0
    %v555 = vadd.f32 %v182, %v554
    %v556 = vpop.f32.mrb[0].mxu0
    %v557 = vadd.f32 %v186, %v556
    %v558 = vpop.f32.mrb[0].mxu0
    %v559 = vadd.f32 %v182, %v558
    %v560 = vpop.f32.mrb[0].mxu0
    %v561 = vadd.f32 %v186, %v560
    %562 = vmatprep.mubr.bf16.mxu0 %v499
    %563 = vmatmul.mubr.bf16.gmra.mrb[0].mxu0 %v498
    %v564 = vpop.f32.mrb[0].mxu0
    %v565 = vadd.f32 %v182, %v564
    %v566 = vpop.f32.mrb[0].mxu0
    %v567 = vadd.f32 %v186, %v566
    %v568 = vpop.f32.mrb[0].mxu0
    %v569 = vadd.f32 %v182, %v568
    %v570 = vpop.f32.mrb[0].mxu0
    %v571 = vadd.f32 %v186, %v570
    %572 = vmatprep.mubr.bf16.mxu0 %v501
    %573 = vmatmul.mubr.bf16.gmra.mrb[0].mxu0 %v500
    %v574 = vpop.f32.mrb[0].mxu0
    %v575 = vadd.f32 %v182, %v574
    %v576 = vpop.f32.mrb[0].mxu0
    %v577 = vadd.f32 %v186, %v576
    %v578 = vpop.f32.mrb[0].mxu0
    %v579 = vadd.f32 %v182, %v578
    %v580 = vpop.f32.mrb[0].mxu0
    %v581 = vadd.f32 %v186, %v580
    %582 = vmatprep.mubr.bf16.mxu0 %v503
    %583 = vmatmul.mubr.bf16.gmra.mrb[0].mxu0 %v502
    %v584 = vpop.f32.mrb[0].mxu0
    %v585 = vadd.f32 %v182, %v584
    %v586 = vpop.f32.mrb[0].mxu0
    %v587 = vadd.f32 %v186, %v586
    %v588 = vpop.f32.mrb[0].mxu0
    %v589 = vadd.f32 %v182, %v588
    %v590 = vpop.f32.mrb[0].mxu0
    %v591 = vadd.f32 %v186, %v590
    %592 = vmatprep.mubr.bf16.mxu0 %v505
    %593 = vmatmul.mubr.bf16.gmra.mrb[0].mxu0 %v504
    %v594 = vpop.f32.mrb[0].mxu0
    %v595 = vadd.f32 %v182, %v594
    %v596 = vpop.f32.mrb[0].mxu0
    %v597 = vadd.f32 %v186, %v596
    %v598 = vpop.f32.mrb[0].mxu0
    %v599 = vadd.f32 %v182, %v598
    %v600 = vpop.f32.mrb[0].mxu0
    %v601 = vadd.f32 %v186, %v600
    %602 = vmatprep.mubr.bf16.mxu0 %v507
    %603 = vmatmul.mubr.bf16.gmra.mrb[0].mxu0 %v506
    %v604 = vpop.f32.mrb[0].mxu0
    %v605 = vadd.f32 %v182, %v604
    %v606 = vpop.f32.mrb[0].mxu0
    %v607 = vadd.f32 %v186, %v606
    %v608 = vpop.f32.mrb[0].mxu0
    %v609 = vadd.f32 %v182, %v608
    %v610 = vpop.f32.mrb[0].mxu0
    %v611 = vadd.f32 %v186, %v610
    %612 = vmatprep.mubr.bf16.mxu0 %v509
    %613 = vmatmul.mubr.bf16.gmra.mrb[0].mxu0 %v508
    %v614 = vpop.f32.mrb[0].mxu0
    %v615 = vadd.f32 %v182, %v614
    %v616 = vpop.f32.mrb[0].mxu0
    %v617 = vadd.f32 %v186, %v616
    %v618 = vpop.f32.mrb[0].mxu0
    %v619 = vadd.f32 %v182, %v618
    %v620 = vpop.f32.mrb[0].mxu0
    %v621 = vadd.f32 %v186, %v620
    %622 = vdwg.mxu0
    %v623 = vmax.f32 %v545, 0.0
    %v624 = vmax.f32 %v547, 0.0
    %v625 = vmax.f32 %v549, 0.0
    %v626 = vmax.f32 %v551, 0.0
    %v627 = vmax.f32 %v555, 0.0
    %v628 = vmax.f32 %v557, 0.0
    %v629 = vmax.f32 %v559, 0.0
    %v630 = vmax.f32 %v561, 0.0
    %v631 = vmax.f32 %v565, 0.0
    %v632 = vmax.f32 %v567, 0.0
    %v633 = vmax.f32 %v569, 0.0
    %v634 = vmax.f32 %v571, 0.0
    %v635 = vmax.f32 %v575, 0.0
    %v636 = vmax.f32 %v577, 0.0
    %v637 = vmax.f32 %v579, 0.0
    %v638 = vmax.f32 %v581, 0.0
    %v639 = vmax.f32 %v585, 0.0
    %v640 = vmax.f32 %v587, 0.0
    %v641 = vmax.f32 %v589, 0.0
    %v642 = vmax.f32 %v591, 0.0
    %v643 = vmax.f32 %v595, 0.0
    %v644 = vmax.f32 %v597, 0.0
    %v645 = vmax.f32 %v599, 0.0
    %v646 = vmax.f32 %v601, 0.0
    %v647 = vmax.f32 %v605, 0.0
    %v648 = vmax.f32 %v607, 0.0
    %v649 = vmax.f32 %v609, 0.0
    %v650 = vmax.f32 %v611, 0.0
    %v651 = vmax.f32 %v615, 0.0
    %v652 = vmax.f32 %v617, 0.0
    %v653 = vmax.f32 %v619, 0.0
    %v654 = vmax.f32 %v621, 0.0
    %v655 = vpack.c.bf16 %v625, %v623
    %v656 = vpack.c.bf16 %v626, %v624
    %v657 = vpack.c.bf16 %v629, %v627
    %v658 = vpack.c.bf16 %v630, %v628
    %v659 = vpack.c.bf16 %v633, %v631
    %v660 = vpack.c.bf16 %v634, %v632
    %v661 = vpack.c.bf16 %v637, %v635
    %v662 = vpack.c.bf16 %v638, %v636
    %v663 = vpack.c.bf16 %v641, %v639
    %v664 = vpack.c.bf16 %v642, %v640
    %v665 = vpack.c.bf16 %v645, %v643
    %v666 = vpack.c.bf16 %v646, %v644
    %v667 = vpack.c.bf16 %v649, %v647
    %v668 = vpack.c.bf16 %v650, %v648
    %v669 = vpack.c.bf16 %v653, %v651
    %v670 = vpack.c.bf16 %v654, %v652
    %v687 = vunpack.c.l.b16 %v125
    %v688 = vunpack.c.l.b16 %v126
    %v689 = vunpack.c.l.b16 %v127
    %v690 = vunpack.c.l.b16 %v128
    %v691 = vunpack.c.l.b16 %v129
    %v692 = vunpack.c.l.b16 %v130
    %v693 = vunpack.c.l.b16 %v131
    %v694 = vunpack.c.l.b16 %v132
    %v695 = vunpack.c.l.b16 %v133
    %v696 = vunpack.c.l.b16 %v134
    %v697 = vunpack.c.l.b16 %v135
    %v698 = vunpack.c.l.b16 %v136
    %v699 = vunpack.c.l.b16 %v137
    %v700 = vunpack.c.l.b16 %v138
    %v701 = vunpack.c.l.b16 %v139
    %v702 = vunpack.c.l.b16 %v140
    %v703 = vpack.c.b16 %v688, %v687
    %v704 = vpack.c.b16 %v690, %v689
    %v705 = vpack.c.b16 %v692, %v691
    %v706 = vpack.c.b16 %v694, %v693
    %v707 = vpack.c.b16 %v696, %v695
    %v708 = vpack.c.b16 %v698, %v697
    %v709 = vpack.c.b16 %v700, %v699
    %v710 = vpack.c.b16 %v702, %v701
    %719 = vmatprep.subr.bf16.mxu0 0
    %720 = vmatpush1.bf16.msra.mxu0 %v703
    %721 = vmatprep.subr.bf16.mxu0 0
    %722 = vmatpush1.bf16.msra.mxu0 %v704
    %723 = vmatprep.subr.bf16.mxu0 0
    %724 = vmatpush1.bf16.msra.mxu0 %v705
    %725 = vmatprep.subr.bf16.mxu0 0
    %726 = vmatpush1.bf16.msra.mxu0 %v706
    %727 = vmatprep.subr.bf16.mxu0 0
    %728 = vmatpush1.bf16.msra.mxu0 %v707
    %729 = vmatprep.subr.bf16.mxu0 0
    %730 = vmatpush1.bf16.msra.mxu0 %v708
    %731 = vmatprep.subr.bf16.mxu0 0
    %732 = vmatpush1.bf16.msra.mxu0 %v709
    %733 = vmatprep.subr.bf16.mxu0 0
    %734 = vmatpush1.bf16.msra.mxu0 %v710
    %735 = vmatprep.subr.bf16.mxu0 0
    %736 = vmatpush1.bf16.msra.mxu0 0
    %737 = vmatprep.subr.bf16.mxu0 0
    %738 = vmatpush1.bf16.msra.mxu0 0
    %739 = vmatprep.subr.bf16.mxu0 0
    %740 = vmatpush1.bf16.msra.mxu0 0
    %741 = vmatprep.subr.bf16.mxu0 0
    %742 = vmatpush1.bf16.msra.mxu0 0
    %743 = vmatprep.subr.bf16.mxu0 0
    %744 = vmatpush1.bf16.msra.mxu0 0
    %745 = vmatprep.subr.bf16.mxu0 0
    %746 = vmatpush1.bf16.msra.mxu0 0
    %747 = vmatprep.subr.bf16.mxu0 0
    %748 = vmatpush1.bf16.msra.mxu0 0
    %749 = vmatprep.subr.bf16.mxu0 0
    %750 = vmatpush1.bf16.msra.mxu0 0
    %751 = vmatprep.mubr.bf16.mxu0 0
    %752 = vmatmul.mubr.bf16.gmra.mrb[0].mxu0 %v655
    %v753 = vpop.f32.mrb[0].mxu0
    %v754 = vadd.f32 0.0, %v753
    %v755 = vpop.f32.mrb[0].mxu0
    %v756 = vpop.f32.mrb[0].mxu0
    %v757 = vadd.f32 0.0, %v756
    %v758 = vpop.f32.mrb[0].mxu0
    %759 = vmatprep.mubr.bf16.mxu0 0
    %760 = vmatmul.mubr.bf16.gmra.mrb[0].mxu0 %v657
    %v761 = vpop.f32.mrb[0].mxu0
    %v762 = vadd.f32 0.0, %v761
    %v763 = vpop.f32.mrb[0].mxu0
    %v764 = vpop.f32.mrb[0].mxu0
    %v765 = vadd.f32 0.0, %v764
    %v766 = vpop.f32.mrb[0].mxu0
    %767 = vmatprep.mubr.bf16.mxu0 0
    %768 = vmatmul.mubr.bf16.gmra.mrb[0].mxu0 %v659
    %v769 = vpop.f32.mrb[0].mxu0
    %v770 = vadd.f32 0.0, %v769
    %v771 = vpop.f32.mrb[0].mxu0
    %v772 = vpop.f32.mrb[0].mxu0
    %v773 = vadd.f32 0.0, %v772
    %v774 = vpop.f32.mrb[0].mxu0
    %775 = vmatprep.mubr.bf16.mxu0 0
    %776 = vmatmul.mubr.bf16.gmra.mrb[0].mxu0 %v661
    %v777 = vpop.f32.mrb[0].mxu0
    %v778 = vadd.f32 0.0, %v777
    %v779 = vpop.f32.mrb[0].mxu0
    %v780 = vpop.f32.mrb[0].mxu0
    %v781 = vadd.f32 0.0, %v780
    %v782 = vpop.f32.mrb[0].mxu0
    %783 = vmatprep.mubr.bf16.mxu0 0
    %784 = vmatmul.mubr.bf16.gmra.mrb[0].mxu0 %v663
    %v785 = vpop.f32.mrb[0].mxu0
    %v786 = vadd.f32 0.0, %v785
    %v787 = vpop.f32.mrb[0].mxu0
    %v788 = vpop.f32.mrb[0].mxu0
    %v789 = vadd.f32 0.0, %v788
    %v790 = vpop.f32.mrb[0].mxu0
    %791 = vmatprep.mubr.bf16.mxu0 0
    %792 = vmatmul.mubr.bf16.gmra.mrb[0].mxu0 %v665
    %v793 = vpop.f32.mrb[0].mxu0
    %v794 = vadd.f32 0.0, %v793
    %v795 = vpop.f32.mrb[0].mxu0
    %v796 = vpop.f32.mrb[0].mxu0
    %v797 = vadd.f32 0.0, %v796
    %v798 = vpop.f32.mrb[0].mxu0
    %799 = vmatprep.mubr.bf16.mxu0 0
    %800 = vmatmul.mubr.bf16.gmra.mrb[0].mxu0 %v667
    %v801 = vpop.f32.mrb[0].mxu0
    %v802 = vadd.f32 0.0, %v801
    %v803 = vpop.f32.mrb[0].mxu0
    %v804 = vpop.f32.mrb[0].mxu0
    %v805 = vadd.f32 0.0, %v804
    %v806 = vpop.f32.mrb[0].mxu0
    %807 = vmatprep.mubr.bf16.mxu0 0
    %808 = vmatmul.mubr.bf16.gmra.mrb[0].mxu0 %v669
    %v809 = vpop.f32.mrb[0].mxu0
    %v810 = vadd.f32 0.0, %v809
    %v811 = vpop.f32.mrb[0].mxu0
    %v812 = vpop.f32.mrb[0].mxu0
    %v813 = vadd.f32 0.0, %v812
    %v814 = vpop.f32.mrb[0].mxu0
    %815 = vdwg.mxu0
    %v832 = vunpack.c.l.b16 %v141
    %v833 = vunpack.c.l.b16 %v142
    %v834 = vunpack.c.l.b16 %v143
    %v835 = vunpack.c.l.b16 %v144
    %v836 = vunpack.c.l.b16 %v145
    %v837 = vunpack.c.l.b16 %v146
    %v838 = vunpack.c.l.b16 %v147
    %v839 = vunpack.c.l.b16 %v148
    %v840 = vunpack.c.l.b16 %v149
    %v841 = vunpack.c.l.b16 %v150
    %v842 = vunpack.c.l.b16 %v151
    %v843 = vunpack.c.l.b16 %v152
    %v844 = vunpack.c.l.b16 %v153
    %v845 = vunpack.c.l.b16 %v154
    %v846 = vunpack.c.l.b16 %v155
    %v847 = vunpack.c.l.b16 %v156
    %v848 = vpack.c.b16 %v833, %v832
    %v849 = vpack.c.b16 %v835, %v834
    %v850 = vpack.c.b16 %v837, %v836
    %v851 = vpack.c.b16 %v839, %v838
    %v852 = vpack.c.b16 %v841, %v840
    %v853 = vpack.c.b16 %v843, %v842
    %v854 = vpack.c.b16 %v845, %v844
    %v855 = vpack.c.b16 %v847, %v846
    %864 = vmatprep.subr.bf16.mxu0 0
    %865 = vmatpush1.bf16.msra.mxu0 %v848
    %866 = vmatprep.subr.bf16.mxu0 0
    %867 = vmatpush1.bf16.msra.mxu0 %v849
    %868 = vmatprep.subr.bf16.mxu0 0
    %869 = vmatpush1.bf16.msra.mxu0 %v850
    %870 = vmatprep.subr.bf16.mxu0 0
    %871 = vmatpush1.bf16.msra.mxu0 %v851
    %872 = vmatprep.subr.bf16.mxu0 0
    %873 = vmatpush1.bf16.msra.mxu0 %v852
    %874 = vmatprep.subr.bf16.mxu0 0
    %875 = vmatpush1.bf16.msra.mxu0 %v853
    %876 = vmatprep.subr.bf16.mxu0 0
    %877 = vmatpush1.bf16.msra.mxu0 %v854
    %878 = vmatprep.subr.bf16.mxu0 0
    %879 = vmatpush1.bf16.msra.mxu0 %v855
    %880 = vmatprep.subr.bf16.mxu0 0
    %881 = vmatpush1.bf16.msra.mxu0 0
    %882 = vmatprep.subr.bf16.mxu0 0
    %883 = vmatpush1.bf16.msra.mxu0 0
    %884 = vmatprep.subr.bf16.mxu0 0
    %885 = vmatpush1.bf16.msra.mxu0 0
    %886 = vmatprep.subr.bf16.mxu0 0
    %887 = vmatpush1.bf16.msra.mxu0 0
    %888 = vmatprep.subr.bf16.mxu0 0
    %889 = vmatpush1.bf16.msra.mxu0 0
    %890 = vmatprep.subr.bf16.mxu0 0
    %891 = vmatpush1.bf16.msra.mxu0 0
    %892 = vmatprep.subr.bf16.mxu0 0
    %893 = vmatpush1.bf16.msra.mxu0 0
    %894 = vmatprep.subr.bf16.mxu0 0
    %895 = vmatpush1.bf16.msra.mxu0 0
    %896 = vmatprep.mubr.bf16.mxu0 0
    %897 = vmatmul.mubr.bf16.gmra.mrb[0].mxu0 %v656
    %v898 = vpop.f32.mrb[0].mxu0
    %v899 = vadd.f32 0.0, %v898
    %v900 = vpop.f32.mrb[0].mxu0
    %v901 = vpop.f32.mrb[0].mxu0
    %v902 = vadd.f32 0.0, %v901
    %v903 = vpop.f32.mrb[0].mxu0
    %904 = vmatprep.mubr.bf16.mxu0 0
    %905 = vmatmul.mubr.bf16.gmra.mrb[0].mxu0 %v658
    %v906 = vpop.f32.mrb[0].mxu0
    %v907 = vadd.f32 0.0, %v906
    %v908 = vpop.f32.mrb[0].mxu0
    %v909 = vpop.f32.mrb[0].mxu0
    %v910 = vadd.f32 0.0, %v909
    %v911 = vpop.f32.mrb[0].mxu0
    %912 = vmatprep.mubr.bf16.mxu0 0
    %913 = vmatmul.mubr.bf16.gmra.mrb[0].mxu0 %v660
    %v914 = vpop.f32.mrb[0].mxu0
    %v915 = vadd.f32 0.0, %v914
    %v916 = vpop.f32.mrb[0].mxu0
    %v917 = vpop.f32.mrb[0].mxu0
    %v918 = vadd.f32 0.0, %v917
    %v919 = vpop.f32.mrb[0].mxu0
    %920 = vmatprep.mubr.bf16.mxu0 0
    %921 = vmatmul.mubr.bf16.gmra.mrb[0].mxu0 %v662
    %v922 = vpop.f32.mrb[0].mxu0
    %v923 = vadd.f32 0.0, %v922
    %v924 = vpop.f32.mrb[0].mxu0
    %v925 = vpop.f32.mrb[0].mxu0
    %v926 = vadd.f32 0.0, %v925
    %v927 = vpop.f32.mrb[0].mxu0
    %928 = vmatprep.mubr.bf16.mxu0 0
    %929 = vmatmul.mubr.bf16.gmra.mrb[0].mxu0 %v664
    %v930 = vpop.f32.mrb[0].mxu0
    %v931 = vadd.f32 0.0, %v930
    %v932 = vpop.f32.mrb[0].mxu0
    %v933 = vpop.f32.mrb[0].mxu0
    %v934 = vadd.f32 0.0, %v933
    %v935 = vpop.f32.mrb[0].mxu0
    %936 = vmatprep.mubr.bf16.mxu0 0
    %937 = vmatmul.mubr.bf16.gmra.mrb[0].mxu0 %v666
    %v938 = vpop.f32.mrb[0].mxu0
    %v939 = vadd.f32 0.0, %v938
    %v940 = vpop.f32.mrb[0].mxu0
    %v941 = vpop.f32.mrb[0].mxu0
    %v942 = vadd.f32 0.0, %v941
    %v943 = vpop.f32.mrb[0].mxu0
    %944 = vmatprep.mubr.bf16.mxu0 0
    %945 = vmatmul.mubr.bf16.gmra.mrb[0].mxu0 %v668
    %v946 = vpop.f32.mrb[0].mxu0
    %v947 = vadd.f32 0.0, %v946
    %v948 = vpop.f32.mrb[0].mxu0
    %v949 = vpop.f32.mrb[0].mxu0
    %v950 = vadd.f32 0.0, %v949
    %v951 = vpop.f32.mrb[0].mxu0
    %952 = vmatprep.mubr.bf16.mxu0 0
    %953 = vmatmul.mubr.bf16.gmra.mrb[0].mxu0 %v670
    %v954 = vpop.f32.mrb[0].mxu0
    %v955 = vadd.f32 0.0, %v954
    %v956 = vpop.f32.mrb[0].mxu0
    %v957 = vpop.f32.mrb[0].mxu0
    %v958 = vadd.f32 0.0, %v957
    %v959 = vpop.f32.mrb[0].mxu0
    %960 = vdwg.mxu0
    %v962 = vlaneseq
    %v963 = vshrl.u32 %v962, 7
    %v964 = vsub.s32 0, %v963
    %v965 = vrot.slane %v159, %v964
    %v966 = vlaneseq
    %v967 = vshrl.u32 %v966, 7
    %v968 = vsub.s32 1, %v967
    %v969 = vrot.slane %v159, %v968
    %v972 = vadd.f32 %v754, %v965
    %v973 = vadd.f32 %v899, %v969
    %v974 = vadd.f32 %v757, %v965
    %v975 = vadd.f32 %v902, %v969
    %v976 = vadd.f32 %v762, %v965
    %v977 = vadd.f32 %v907, %v969
    %v978 = vadd.f32 %v765, %v965
    %v979 = vadd.f32 %v910, %v969
    %v980 = vadd.f32 %v770, %v965
    %v981 = vadd.f32 %v915, %v969
    %v982 = vadd.f32 %v773, %v965
    %v983 = vadd.f32 %v918, %v969
    %v984 = vadd.f32 %v778, %v965
    %v985 = vadd.f32 %v923, %v969
    %v986 = vadd.f32 %v781, %v965
    %v987 = vadd.f32 %v926, %v969
    %v988 = vadd.f32 %v786, %v965
    %v989 = vadd.f32 %v931, %v969
    %v990 = vadd.f32 %v789, %v965
    %v991 = vadd.f32 %v934, %v969
    %v992 = vadd.f32 %v794, %v965
    %v993 = vadd.f32 %v939, %v969
    %v994 = vadd.f32 %v797, %v965
    %v995 = vadd.f32 %v942, %v969
    %v996 = vadd.f32 %v802, %v965
    %v997 = vadd.f32 %v947, %v969
    %v998 = vadd.f32 %v805, %v965
    %v999 = vadd.f32 %v950, %v969
    %v1000 = vadd.f32 %v810, %v965
    %v1001 = vadd.f32 %v955, %v969
    %v1002 = vadd.f32 %v813, %v965
    %v1003 = vadd.f32 %v958, %v969
    %v1004 = vmax.f32 %v972, 0.0
    %v1005 = vmax.f32 %v973, 0.0
    %v1006 = vmax.f32 %v974, 0.0
    %v1007 = vmax.f32 %v975, 0.0
    %v1008 = vmax.f32 %v976, 0.0
    %v1009 = vmax.f32 %v977, 0.0
    %v1010 = vmax.f32 %v978, 0.0
    %v1011 = vmax.f32 %v979, 0.0
    %v1012 = vmax.f32 %v980, 0.0
    %v1013 = vmax.f32 %v981, 0.0
    %v1014 = vmax.f32 %v982, 0.0
    %v1015 = vmax.f32 %v983, 0.0
    %v1016 = vmax.f32 %v984, 0.0
    %v1017 = vmax.f32 %v985, 0.0
    %v1018 = vmax.f32 %v986, 0.0
    %v1019 = vmax.f32 %v987, 0.0
    %v1020 = vmax.f32 %v988, 0.0
    %v1021 = vmax.f32 %v989, 0.0
    %v1022 = vmax.f32 %v990, 0.0
    %v1023 = vmax.f32 %v991, 0.0
    %v1024 = vmax.f32 %v992, 0.0
    %v1025 = vmax.f32 %v993, 0.0
    %v1026 = vmax.f32 %v994, 0.0
    %v1027 = vmax.f32 %v995, 0.0
    %v1028 = vmax.f32 %v996, 0.0
    %v1029 = vmax.f32 %v997, 0.0
    %v1030 = vmax.f32 %v998, 0.0
    %v1031 = vmax.f32 %v999, 0.0
    %v1032 = vmax.f32 %v1000, 0.0
    %v1033 = vmax.f32 %v1001, 0.0
    %v1034 = vmax.f32 %v1002, 0.0
    %v1035 = vmax.f32 %v1003, 0.0
    %v1036 = vpack.c.bf16 %v1006, %v1004
    %v1037 = vpack.c.bf16 %v1007, %v1005
    %v1038 = vpack.c.bf16 %v1010, %v1008
    %v1039 = vpack.c.bf16 %v1011, %v1009
    %v1040 = vpack.c.bf16 %v1014, %v1012
    %v1041 = vpack.c.bf16 %v1015, %v1013
    %v1042 = vpack.c.bf16 %v1018, %v1016
    %v1043 = vpack.c.bf16 %v1019, %v1017
    %v1044 = vpack.c.bf16 %v1022, %v1020
    %v1045 = vpack.c.bf16 %v1023, %v1021
    %v1046 = vpack.c.bf16 %v1026, %v1024
    %v1047 = vpack.c.bf16 %v1027, %v1025
    %v1048 = vpack.c.bf16 %v1030, %v1028
    %v1049 = vpack.c.bf16 %v1031, %v1029
    %v1050 = vpack.c.bf16 %v1034, %v1032
    %v1051 = vpack.c.bf16 %v1035, %v1033
    %v1053 = vlaneseq
    %v1054 = vshrl.u32 %v1053, 7
    %v1055 = vsub.s32 0, %v1054
    %v1056 = vrot.slane %v161, %v1055
    %v1057 = vlaneseq
    %v1058 = vshrl.u32 %v1057, 7
    %v1059 = vsub.s32 1, %v1058
    %v1060 = vrot.slane %v161, %v1059
    %v1095 = vunpack.c.l.b16 %v93
    %v1096 = vunpack.c.h.b16 %v93
    %v1097 = vunpack.c.l.b16 %v94
    %v1098 = vunpack.c.h.b16 %v94
    %v1099 = vunpack.c.l.b16 %v95
    %v1100 = vunpack.c.h.b16 %v95
    %v1101 = vunpack.c.l.b16 %v96
    %v1102 = vunpack.c.h.b16 %v96
    %v1103 = vunpack.c.l.b16 %v97
    %v1104 = vunpack.c.h.b16 %v97
    %v1105 = vunpack.c.l.b16 %v98
    %v1106 = vunpack.c.h.b16 %v98
    %v1107 = vunpack.c.l.b16 %v99
    %v1108 = vunpack.c.h.b16 %v99
    %v1109 = vunpack.c.l.b16 %v100
    %v1110 = vunpack.c.h.b16 %v100
    %v1111 = vunpack.c.l.b16 %v101
    %v1112 = vunpack.c.h.b16 %v101
    %v1113 = vunpack.c.l.b16 %v102
    %v1114 = vunpack.c.h.b16 %v102
    %v1115 = vunpack.c.l.b16 %v103
    %v1116 = vunpack.c.h.b16 %v103
    %v1117 = vunpack.c.l.b16 %v104
    %v1118 = vunpack.c.h.b16 %v104
    %v1119 = vunpack.c.l.b16 %v105
    %v1120 = vunpack.c.h.b16 %v105
    %v1121 = vunpack.c.l.b16 %v106
    %v1122 = vunpack.c.h.b16 %v106
    %v1123 = vunpack.c.l.b16 %v107
    %v1124 = vunpack.c.h.b16 %v107
    %v1125 = vunpack.c.l.b16 %v108
    %v1126 = vunpack.c.h.b16 %v108
    %v1127 = vunpack.c.l.b16 %v109
    %v1128 = vunpack.c.h.b16 %v109
    %v1129 = vunpack.c.l.b16 %v110
    %v1130 = vunpack.c.h.b16 %v110
    %v1131 = vunpack.c.l.b16 %v111
    %v1132 = vunpack.c.h.b16 %v111
    %v1133 = vunpack.c.l.b16 %v112
    %v1134 = vunpack.c.h.b16 %v112
    %v1135 = vunpack.c.l.b16 %v113
    %v1136 = vunpack.c.h.b16 %v113
    %v1137 = vunpack.c.l.b16 %v114
    %v1138 = vunpack.c.h.b16 %v114
    %v1139 = vunpack.c.l.b16 %v115
    %v1140 = vunpack.c.h.b16 %v115
    %v1141 = vunpack.c.l.b16 %v116
    %v1142 = vunpack.c.h.b16 %v116
    %v1143 = vunpack.c.l.b16 %v117
    %v1144 = vunpack.c.h.b16 %v117
    %v1145 = vunpack.c.l.b16 %v118
    %v1146 = vunpack.c.h.b16 %v118
    %v1147 = vunpack.c.l.b16 %v119
    %v1148 = vunpack.c.h.b16 %v119
    %v1149 = vunpack.c.l.b16 %v120
    %v1150 = vunpack.c.h.b16 %v120
    %v1151 = vunpack.c.l.b16 %v121
    %v1152 = vunpack.c.h.b16 %v121
    %v1153 = vunpack.c.l.b16 %v122
    %v1154 = vunpack.c.h.b16 %v122
    %v1155 = vunpack.c.l.b16 %v123
    %v1156 = vunpack.c.h.b16 %v123
    %v1157 = vunpack.c.l.b16 %v124
    %v1158 = vunpack.c.h.b16 %v124
    %v1159 = vpack.c.b16 %v1097, %v1095
    %v1160 = vpack.c.b16 %v1098, %v1096
    %v1161 = vpack.c.b16 %v1101, %v1099
    %v1162 = vpack.c.b16 %v1102, %v1100
    %v1163 = vpack.c.b16 %v1105, %v1103
    %v1164 = vpack.c.b16 %v1106, %v1104
    %v1165 = vpack.c.b16 %v1109, %v1107
    %v1166 = vpack.c.b16 %v1110, %v1108
    %v1167 = vpack.c.b16 %v1113, %v1111
    %v1168 = vpack.c.b16 %v1114, %v1112
    %v1169 = vpack.c.b16 %v1117, %v1115
    %v1170 = vpack.c.b16 %v1118, %v1116
    %v1171 = vpack.c.b16 %v1121, %v1119
    %v1172 = vpack.c.b16 %v1122, %v1120
    %v1173 = vpack.c.b16 %v1125, %v1123
    %v1174 = vpack.c.b16 %v1126, %v1124
    %v1175 = vpack.c.b16 %v1129, %v1127
    %v1176 = vpack.c.b16 %v1130, %v1128
    %v1177 = vpack.c.b16 %v1133, %v1131
    %v1178 = vpack.c.b16 %v1134, %v1132
    %v1179 = vpack.c.b16 %v1137, %v1135
    %v1180 = vpack.c.b16 %v1138, %v1136
    %v1181 = vpack.c.b16 %v1141, %v1139
    %v1182 = vpack.c.b16 %v1142, %v1140
    %v1183 = vpack.c.b16 %v1145, %v1143
    %v1184 = vpack.c.b16 %v1146, %v1144
    %v1185 = vpack.c.b16 %v1149, %v1147
    %v1186 = vpack.c.b16 %v1150, %v1148
    %v1187 = vpack.c.b16 %v1153, %v1151
    %v1188 = vpack.c.b16 %v1154, %v1152
    %v1189 = vpack.c.b16 %v1157, %v1155
    %v1190 = vpack.c.b16 %v1158, %v1156
    %1223 = vmatprep.subr.bf16.mxu0 %v1160
    %1224 = vmatpush1.bf16.msra.mxu0 %v1159
    %1225 = vmatprep.subr.bf16.mxu0 %v1162
    %1226 = vmatpush1.bf16.msra.mxu0 %v1161
    %1227 = vmatprep.subr.bf16.mxu0 %v1164
    %1228 = vmatpush1.bf16.msra.mxu0 %v1163
    %1229 = vmatprep.subr.bf16.mxu0 %v1166
    %1230 = vmatpush1.bf16.msra.mxu0 %v1165
    %1231 = vmatprep.subr.bf16.mxu0 %v1168
    %1232 = vmatpush1.bf16.msra.mxu0 %v1167
    %1233 = vmatprep.subr.bf16.mxu0 %v1170
    %1234 = vmatpush1.bf16.msra.mxu0 %v1169
    %1235 = vmatprep.subr.bf16.mxu0 %v1172
    %1236 = vmatpush1.bf16.msra.mxu0 %v1171
    %1237 = vmatprep.subr.bf16.mxu0 %v1174
    %1238 = vmatpush1.bf16.msra.mxu0 %v1173
    %1239 = vmatprep.subr.bf16.mxu0 %v1176
    %1240 = vmatpush1.bf16.msra.mxu0 %v1175
    %1241 = vmatprep.subr.bf16.mxu0 %v1178
    %1242 = vmatpush1.bf16.msra.mxu0 %v1177
    %1243 = vmatprep.subr.bf16.mxu0 %v1180
    %1244 = vmatpush1.bf16.msra.mxu0 %v1179
    %1245 = vmatprep.subr.bf16.mxu0 %v1182
    %1246 = vmatpush1.bf16.msra.mxu0 %v1181
    %1247 = vmatprep.subr.bf16.mxu0 %v1184
    %1248 = vmatpush1.bf16.msra.mxu0 %v1183
    %1249 = vmatprep.subr.bf16.mxu0 %v1186
    %1250 = vmatpush1.bf16.msra.mxu0 %v1185
    %1251 = vmatprep.subr.bf16.mxu0 %v1188
    %1252 = vmatpush1.bf16.msra.mxu0 %v1187
    %1253 = vmatprep.subr.bf16.mxu0 %v1190
    %1254 = vmatpush1.bf16.msra.mxu0 %v1189
    %1255 = vmatprep.mubr.bf16.mxu0 %v1037
    %1256 = vmatmul.mubr.bf16.gmra.mrb[0].mxu0 %v1036
    %v1257 = vpop.f32.mrb[0].mxu0
    %v1258 = vadd.f32 %v1056, %v1257
    %v1259 = vpop.f32.mrb[0].mxu0
    %v1260 = vadd.f32 %v1060, %v1259
    %v1261 = vpop.f32.mrb[0].mxu0
    %v1262 = vadd.f32 %v1056, %v1261
    %v1263 = vpop.f32.mrb[0].mxu0
    %v1264 = vadd.f32 %v1060, %v1263
    %1265 = vmatprep.mubr.bf16.mxu0 %v1039
    %1266 = vmatmul.mubr.bf16.gmra.mrb[0].mxu0 %v1038
    %v1267 = vpop.f32.mrb[0].mxu0
    %v1268 = vadd.f32 %v1056, %v1267
    %v1269 = vpop.f32.mrb[0].mxu0
    %v1270 = vadd.f32 %v1060, %v1269
    %v1271 = vpop.f32.mrb[0].mxu0
    %v1272 = vadd.f32 %v1056, %v1271
    %v1273 = vpop.f32.mrb[0].mxu0
    %v1274 = vadd.f32 %v1060, %v1273
    %1275 = vmatprep.mubr.bf16.mxu0 %v1041
    %1276 = vmatmul.mubr.bf16.gmra.mrb[0].mxu0 %v1040
    %v1277 = vpop.f32.mrb[0].mxu0
    %v1278 = vadd.f32 %v1056, %v1277
    %v1279 = vpop.f32.mrb[0].mxu0
    %v1280 = vadd.f32 %v1060, %v1279
    %v1281 = vpop.f32.mrb[0].mxu0
    %v1282 = vadd.f32 %v1056, %v1281
    %v1283 = vpop.f32.mrb[0].mxu0
    %v1284 = vadd.f32 %v1060, %v1283
    %1285 = vmatprep.mubr.bf16.mxu0 %v1043
    %1286 = vmatmul.mubr.bf16.gmra.mrb[0].mxu0 %v1042
    %v1287 = vpop.f32.mrb[0].mxu0
    %v1288 = vadd.f32 %v1056, %v1287
    %v1289 = vpop.f32.mrb[0].mxu0
    %v1290 = vadd.f32 %v1060, %v1289
    %v1291 = vpop.f32.mrb[0].mxu0
    %v1292 = vadd.f32 %v1056, %v1291
    %v1293 = vpop.f32.mrb[0].mxu0
    %v1294 = vadd.f32 %v1060, %v1293
    %1295 = vmatprep.mubr.bf16.mxu0 %v1045
    %1296 = vmatmul.mubr.bf16.gmra.mrb[0].mxu0 %v1044
    %v1297 = vpop.f32.mrb[0].mxu0
    %v1298 = vadd.f32 %v1056, %v1297
    %v1299 = vpop.f32.mrb[0].mxu0
    %v1300 = vadd.f32 %v1060, %v1299
    %v1301 = vpop.f32.mrb[0].mxu0
    %v1302 = vadd.f32 %v1056, %v1301
    %v1303 = vpop.f32.mrb[0].mxu0
    %v1304 = vadd.f32 %v1060, %v1303
    %1305 = vmatprep.mubr.bf16.mxu0 %v1047
    %1306 = vmatmul.mubr.bf16.gmra.mrb[0].mxu0 %v1046
    %v1307 = vpop.f32.mrb[0].mxu0
    %v1308 = vadd.f32 %v1056, %v1307
    %v1309 = vpop.f32.mrb[0].mxu0
    %v1310 = vadd.f32 %v1060, %v1309
    %v1311 = vpop.f32.mrb[0].mxu0
    %v1312 = vadd.f32 %v1056, %v1311
    %v1313 = vpop.f32.mrb[0].mxu0
    %v1314 = vadd.f32 %v1060, %v1313
    %1315 = vmatprep.mubr.bf16.mxu0 %v1049
    %1316 = vmatmul.mubr.bf16.gmra.mrb[0].mxu0 %v1048
    %v1317 = vpop.f32.mrb[0].mxu0
    %v1318 = vadd.f32 %v1056, %v1317
    %v1319 = vpop.f32.mrb[0].mxu0
    %v1320 = vadd.f32 %v1060, %v1319
    %v1321 = vpop.f32.mrb[0].mxu0
    %v1322 = vadd.f32 %v1056, %v1321
    %v1323 = vpop.f32.mrb[0].mxu0
    %v1324 = vadd.f32 %v1060, %v1323
    %1325 = vmatprep.mubr.bf16.mxu0 %v1051
    %1326 = vmatmul.mubr.bf16.gmra.mrb[0].mxu0 %v1050
    %v1327 = vpop.f32.mrb[0].mxu0
    %v1328 = vadd.f32 %v1056, %v1327
    %v1329 = vpop.f32.mrb[0].mxu0
    %v1330 = vadd.f32 %v1060, %v1329
    %v1331 = vpop.f32.mrb[0].mxu0
    %v1332 = vadd.f32 %v1056, %v1331
    %v1333 = vpop.f32.mrb[0].mxu0
    %v1334 = vadd.f32 %v1060, %v1333
    %1335 = vdwg.mxu0
    %v1336 = vmax.f32 %v1258, 0.0
    %v1337 = vmax.f32 %v1260, 0.0
    %v1338 = vmax.f32 %v1262, 0.0
    %v1339 = vmax.f32 %v1264, 0.0
    %v1340 = vmax.f32 %v1268, 0.0
    %v1341 = vmax.f32 %v1270, 0.0
    %v1342 = vmax.f32 %v1272, 0.0
    %v1343 = vmax.f32 %v1274, 0.0
    %v1344 = vmax.f32 %v1278, 0.0
    %v1345 = vmax.f32 %v1280, 0.0
    %v1346 = vmax.f32 %v1282, 0.0
    %v1347 = vmax.f32 %v1284, 0.0
    %v1348 = vmax.f32 %v1288, 0.0
    %v1349 = vmax.f32 %v1290, 0.0
    %v1350 = vmax.f32 %v1292, 0.0
    %v1351 = vmax.f32 %v1294, 0.0
    %v1352 = vmax.f32 %v1298, 0.0
    %v1353 = vmax.f32 %v1300, 0.0
    %v1354 = vmax.f32 %v1302, 0.0
    %v1355 = vmax.f32 %v1304, 0.0
    %v1356 = vmax.f32 %v1308, 0.0
    %v1357 = vmax.f32 %v1310, 0.0
    %v1358 = vmax.f32 %v1312, 0.0
    %v1359 = vmax.f32 %v1314, 0.0
    %v1360 = vmax.f32 %v1318, 0.0
    %v1361 = vmax.f32 %v1320, 0.0
    %v1362 = vmax.f32 %v1322, 0.0
    %v1363 = vmax.f32 %v1324, 0.0
    %v1364 = vmax.f32 %v1328, 0.0
    %v1365 = vmax.f32 %v1330, 0.0
    %v1366 = vmax.f32 %v1332, 0.0
    %v1367 = vmax.f32 %v1334, 0.0
    %v1368 = vmul.f32 %v1336, %v29
    %v1369 = vmul.f32 %v1337, %v30
    %v1370 = vmul.f32 %v1338, %v31
    %v1371 = vmul.f32 %v1339, %v32
    %v1372 = vmul.f32 %v1340, %v33
    %v1373 = vmul.f32 %v1341, %v34
    %v1374 = vmul.f32 %v1342, %v35
    %v1375 = vmul.f32 %v1343, %v36
    %v1376 = vmul.f32 %v1344, %v37
    %v1377 = vmul.f32 %v1345, %v38
    %v1378 = vmul.f32 %v1346, %v39
    %v1379 = vmul.f32 %v1347, %v40
    %v1380 = vmul.f32 %v1348, %v41
    %v1381 = vmul.f32 %v1349, %v42
    %v1382 = vmul.f32 %v1350, %v43
    %v1383 = vmul.f32 %v1351, %v44
    %v1384 = vmul.f32 %v1352, %v45
    %v1385 = vmul.f32 %v1353, %v46
    %v1386 = vmul.f32 %v1354, %v47
    %v1387 = vmul.f32 %v1355, %v48
    %v1388 = vmul.f32 %v1356, %v49
    %v1389 = vmul.f32 %v1357, %v50
    %v1390 = vmul.f32 %v1358, %v51
    %v1391 = vmul.f32 %v1359, %v52
    %v1392 = vmul.f32 %v1360, %v53
    %v1393 = vmul.f32 %v1361, %v54
    %v1394 = vmul.f32 %v1362, %v55
    %v1395 = vmul.f32 %v1363, %v56
    %v1396 = vmul.f32 %v1364, %v57
    %v1397 = vmul.f32 %v1365, %v58
    %v1398 = vmul.f32 %v1366, %v59
    %v1399 = vmul.f32 %v1367, %v60
    %v1400 = vadd.f32 %v1368, %v1370
    %v1401 = vadd.f32 %v1400, %v1372
    %v1402 = vadd.f32 %v1401, %v1374
    %v1403 = vadd.f32 %v1402, %v1376
    %v1404 = vadd.f32 %v1403, %v1378
    %v1405 = vadd.f32 %v1404, %v1380
    %v1406 = vadd.f32 %v1405, %v1382
    %v1407 = vadd.f32 %v1406, %v1384
    %v1408 = vadd.f32 %v1407, %v1386
    %v1409 = vadd.f32 %v1408, %v1388
    %v1410 = vadd.f32 %v1409, %v1390
    %v1411 = vadd.f32 %v1410, %v1392
    %v1412 = vadd.f32 %v1411, %v1394
    %v1413 = vadd.f32 %v1412, %v1396
    %v1414 = vadd.f32 %v1413, %v1398
    %1415 = vadd.xlane.f32.xlu0 %v1414
    %v1416 = vpop.xlane.xlu0 %1415
    %v1417 = vrot.slane %v1416, 4
    %v1418 = vadd.f32 %v1416, %v1417
    %v1419 = vrot.slane %v1418, 2
    %v1420 = vadd.f32 %v1418, %v1419
    %v1421 = vrot.slane %v1420, 1
    %v1422 = vadd.f32 %v1420, %v1421
    %s1423 = vtos %v1422
    %v1424 = vstv %s1423
    %v1425 = vrcp.pop 16384.0
    %v1426 = vmul.f32 %v1424, %v1425
    %v1427 = vand.u32 2147483647, %v1426
    %v1428 = vadd.f32 %v1427, 0.0001
    %v1429 = vrcp.pop %v1428
    %v1430 = vmul.f32 %v1368, %v1429
    %v1431 = vmul.f32 %v1370, %v1429
    %v1432 = vmul.f32 %v1372, %v1429
    %v1433 = vmul.f32 %v1374, %v1429
    %v1434 = vmul.f32 %v1376, %v1429
    %v1435 = vmul.f32 %v1378, %v1429
    %v1436 = vmul.f32 %v1380, %v1429
    %v1437 = vmul.f32 %v1382, %v1429
    %v1438 = vmul.f32 %v1384, %v1429
    %v1439 = vmul.f32 %v1386, %v1429
    %v1440 = vmul.f32 %v1388, %v1429
    %v1441 = vmul.f32 %v1390, %v1429
    %v1442 = vmul.f32 %v1392, %v1429
    %v1443 = vmul.f32 %v1394, %v1429
    %v1444 = vmul.f32 %v1396, %v1429
    %v1445 = vmul.f32 %v1398, %v1429
    %1446 = vst [vmem:[%s3] sm:$0xff] %v1430
    %1447 = vst [vmem:[%s3 + $0x8] sm:$0xff] %v1369
    %1448 = vst [vmem:[%s3 + $0x10] sm:$0xff] %v1431
    %1449 = vst [vmem:[%s3 + $0x18] sm:$0xff] %v1371
    %1450 = vst [vmem:[%s3 + $0x20] sm:$0xff] %v1432
    %1451 = vst [vmem:[%s3 + $0x28] sm:$0xff] %v1373
    %1452 = vst [vmem:[%s3 + $0x30] sm:$0xff] %v1433
    %1453 = vst [vmem:[%s3 + $0x38] sm:$0xff] %v1375
    %1454 = vst [vmem:[%s3 + $0x40] sm:$0xff] %v1434
    %1455 = vst [vmem:[%s3 + $0x48] sm:$0xff] %v1377
    %1456 = vst [vmem:[%s3 + $0x50] sm:$0xff] %v1435
    %1457 = vst [vmem:[%s3 + $0x58] sm:$0xff] %v1379
    %1458 = vst [vmem:[%s3 + $0x60] sm:$0xff] %v1436
    %1459 = vst [vmem:[%s3 + $0x68] sm:$0xff] %v1381
    %1460 = vst [vmem:[%s3 + $0x70] sm:$0xff] %v1437
    %1461 = vst [vmem:[%s3 + $0x78] sm:$0xff] %v1383
    %1462 = vst [vmem:[%s3 + $0x80] sm:$0xff] %v1438
    %1463 = vst [vmem:[%s3 + $0x88] sm:$0xff] %v1385
    %1464 = vst [vmem:[%s3 + $0x90] sm:$0xff] %v1439
    %1465 = vst [vmem:[%s3 + $0x98] sm:$0xff] %v1387
    %1466 = vst [vmem:[%s3 + $0xa0] sm:$0xff] %v1440
    %1467 = vst [vmem:[%s3 + $0xa8] sm:$0xff] %v1389
    %1468 = vst [vmem:[%s3 + $0xb0] sm:$0xff] %v1441
    %1469 = vst [vmem:[%s3 + $0xb8] sm:$0xff] %v1391
    %1470 = vst [vmem:[%s3 + $0xc0] sm:$0xff] %v1442
    %1471 = vst [vmem:[%s3 + $0xc8] sm:$0xff] %v1393
    %1472 = vst [vmem:[%s3 + $0xd0] sm:$0xff] %v1443
    %1473 = vst [vmem:[%s3 + $0xd8] sm:$0xff] %v1395
    %1474 = vst [vmem:[%s3 + $0xe0] sm:$0xff] %v1444
    %1475 = vst [vmem:[%s3 + $0xe8] sm:$0xff] %v1397
    %1476 = vst [vmem:[%s3 + $0xf0] sm:$0xff] %v1445
    %1477 = vst [vmem:[%s3 + $0xf8] sm:$0xff] %v1399
    // Predicated region
    $region18: #{cross_attention_forward.1} parent=1 // pred_check
      _
    $region19: #{cross_attention_forward.1} parent=1 // pred_check_branch
      %1479 = sbr.rel (0) target = $region21
    $region20: #{cross_attention_forward.1} parent=1 // pred_region
      _
    $region21: #{cross_attention_forward.1} parent=1 // pred_fallthru
      _
    // Predicated region
    $region22: #{cross_attention_forward.1} parent=1 // pred_check
      _
    $region23: #{cross_attention_forward.1} parent=1 // pred_check_branch
      %1481 = sbr.rel (0) target = $region25
    $region24: #{cross_attention_forward.1} parent=1 // pred_region
      _
    $region25: #{cross_attention_forward.1} parent=1 // pred_fallthru
      _
    %1482 = vsyncpa [#allocation3], 1

</llo_original>
